<compile_context>
chip_gen: v7x
topology: tpu7x:2x2x1
jax: 0.10.0
libtpu: 0.0.40
codegen_flags: <defaults>
</compile_context>

<pallas_src>
import jax
import jax.numpy as jnp
import numpy as np
from jax.experimental import pallas as pl
from jax.experimental.pallas import tpu as pltpu


def _round_up(x, m):
    return ((x + m - 1) // m) * m


def _sepconv_kernel(x_ref, h_ref, wdw_ref, wpw_ref, b_ref, o_ref):
    # x_ref  : (1, TL, Cp)   main input tile ('same' zero-padding applied globally)
    # h_ref  : (1, TH, Cp)   halo rows immediately following the main tile
    # wdw_ref: (K, Cp)       depthwise taps, one K-tap filter per channel
    # wpw_ref: (Cp, Op)      pointwise (1x1) weights
    # b_ref  : (1, Op)       fused bias  (b_pw + w_pw @ b_dw)
    # o_ref  : (1, TL, Op)
    TL = o_ref.shape[1]
    K = wdw_ref.shape[0]

    # Load the slab once; build the K shifted views from the in-register value
    # (XLU sublane shifts) instead of K separate full-slab ref loads.
    xw = jnp.concatenate([x_ref[0], h_ref[0]], axis=0)          # (TL + TH, Cp)

    acc = xw[0:TL, :] * wdw_ref[0, :][None, :]
    for k in range(1, K):                                       # K static & small -> unrolled
        acc = acc + xw[k:k + TL, :] * wdw_ref[k, :][None, :]

    # Pointwise 1x1 conv == matmul over the lane-dense channel axis -> MXU.
    # (Kept f32 to preserve module semantics; cast acc/wpw to bf16 here for extra
    #  MXU throughput on v6e/v7x if reduced precision is acceptable.)
    out = jnp.dot(acc, wpw_ref[...], preferred_element_type=jnp.float32)
    o_ref[0, :, :] = (out + b_ref[...]).astype(o_ref.dtype)


def _choose_l_tile(L, K, Cp, Op, vmem_budget_bytes=20 * 1024 * 1024, max_tl=2048):
    """Largest L-tile (a multiple of the halo block TH) whose double-buffered
    input/halo/output footprint plus resident weights fits the VMEM budget."""
    TH = max(8, _round_up(max(K - 1, 1), 8))

    def footprint(tl):
        stream = (tl * Cp + TH * Cp + tl * Op) * 4      # one pipeline buffer set
        resident = (K * Cp + Cp * Op + Op) * 4          # weights + fused bias
        return 2 * stream + resident                    # double-buffered streams

    tl = min(_round_up(L, TH), _round_up(max_tl, TH))
    while tl > TH and footprint(tl) > vmem_budget_bytes:
        tl -= TH
    return tl, TH


def separable_conv1d(x_ncl, w_dw, b_dw, w_pw, b_pw):
    """x_ncl: (N, C, L) float32, PyTorch Conv1d layout.
    w_dw: (C, K) depthwise, b_dw: (C,), w_pw: (O, C) pointwise, b_pw: (O,).
    Returns (N, O, L) float32."""
    N, C, L = x_ncl.shape
    K = w_dw.shape[1]
    O = w_pw.shape[0]

    # PyTorch padding='same' (stride=1, dilation=1): left = (K-1)//2.
    pad_l = (K - 1) // 2

    # Lane-dense channel axes (zero-padded channels contribute exactly zero).
    Cp = max(128, _round_up(C, 128))
    Op = max(128, _round_up(O, 128))

    TL, TH = _choose_l_tile(L, K, Cp, Op)
    nLt = pl.cdiv(L, TL)
    Ltot = nLt * TL + TH            # main tiles + trailing halo block (zeros past data)
    r = TL // TH                    # halo block-index stride (TL is a multiple of TH)

    # Channels-last + zero padding ('same' halo along L, lane padding along C).
    # Note: this pad/transpose is still one HBM round trip outside the kernel; a
    # channels-last model layout would remove it entirely.
    x_nlc = jnp.transpose(x_ncl, (0, 2, 1)).astype(jnp.float32)               # (N, L, C)
    x_pad = jnp.pad(x_nlc, ((0, 0), (pad_l, Ltot - L - pad_l), (0, Cp - C)))  # (N, Ltot, Cp)

    wdw_kc = jnp.pad(jnp.transpose(w_dw, (1, 0)),
                     ((0, 0), (0, Cp - C))).astype(jnp.float32)               # (K, Cp)
    wpw_co = jnp.pad(jnp.transpose(w_pw, (1, 0)),
                     ((0, Cp - C), (0, Op - O))).astype(jnp.float32)          # (Cp, Op)
    # Fold the depthwise bias into the pointwise bias (the op is linear).
    b_eff = b_pw.astype(jnp.float32) + w_pw.astype(jnp.float32) @ b_dw.astype(jnp.float32)
    b_eff = jnp.pad(b_eff, (0, Op - O)).reshape(1, Op)                        # (1, Op)

    out_nlo = pl.pallas_call(
        _sepconv_kernel,
        out_shape=jax.ShapeDtypeStruct((N, nLt * TL, Op), jnp.float32),
        grid_spec=pltpu.PrefetchScalarGridSpec(
            num_scalar_prefetch=0,
            grid=(N, nLt),
            in_specs=[
                pl.BlockSpec((1, TL, Cp), lambda n, t: (n, t, 0)),             # main tile
                pl.BlockSpec((1, TH, Cp), lambda n, t: (n, (t + 1) * r, 0)),   # halo rows
                pl.BlockSpec((K, Cp), lambda n, t: (0, 0)),                    # depthwise W
                pl.BlockSpec((Cp, Op), lambda n, t: (0, 0)),                   # pointwise W
                pl.BlockSpec((1, Op), lambda n, t: (0, 0)),                    # fused bias
            ],
            out_specs=pl.BlockSpec((1, TL, Op), lambda n, t: (n, t, 0)),
        ),
        compiler_params=pltpu.CompilerParams(
            dimension_semantics=("parallel", "parallel"),
            vmem_limit_bytes=32 * 1024 * 1024),
    )(x_pad, x_pad, wdw_kc, wpw_co, b_eff)

    # Drop the L / O padding and return PyTorch layout.
    return jnp.transpose(out_nlo[:, :L, :O], (0, 2, 1))                        # (N, O, L)


def _reference(x_ncl, w_dw, b_dw, w_pw, b_pw):
    """Pure-JAX reference matching nn.Conv1d(groups=C, padding='same') + 1x1 conv."""
    N, C, L = x_ncl.shape
    K = w_dw.shape[1]
    pad_l = (K - 1) // 2
    pad_r = (K - 1) - pad_l
    dw = jax.lax.conv_general_dilated(
        x_ncl, w_dw.reshape(C, 1, K),
        window_strides=(1,), padding=[(pad_l, pad_r)],
        dimension_numbers=("NCH", "OIH", "NCH"),
        feature_group_count=C)
    dw = dw + b_dw[None, :, None]
    pw = jnp.einsum("ncl,oc->nol", dw, w_pw) + b_pw[None, :, None]
    return pw


if __name__ == "__main__":
    # Small shapes: batch=2, in_channels=4, out_channels=8, kernel_size=3, length=16
    N, C, O, K, L = 2, 4, 8, 3, 16

    key = jax.random.PRNGKey(0)
    k_x, k_wd, k_bd, k_wp, k_bp = jax.random.split(key, 5)

    x = jax.random.normal(k_x, (N, C, L), dtype=jnp.float32)
    # Deterministic synthetic parameters (shapes per nn.Conv1d __init__).
    w_dw = jax.random.normal(k_wd, (C, K), dtype=jnp.float32) * 0.5   # depthwise (C,1,K) squeezed
    b_dw = jax.random.normal(k_bd, (C,), dtype=jnp.float32) * 0.1
    w_pw = jax.random.normal(k_wp, (O, C), dtype=jnp.float32) * 0.5   # pointwise (O,C,1) squeezed
    b_pw = jax.random.normal(k_bp, (O,), dtype=jnp.float32) * 0.1

    out = separable_conv1d(x, w_dw, b_dw, w_pw, b_pw)
    out = jax.block_until_ready(out)

    ref = jax.block_until_ready(_reference(x, w_dw, b_dw, w_pw, b_pw))
    assert out.shape == (N, O, L)
    np.testing.assert_allclose(np.asarray(out), np.asarray(ref), rtol=1e-5, atol=1e-5)

    print("KERNEL_OK")
</pallas_src>

<mosaic_0001>
module attributes {stable_mosaic.version = 11 : i64} {
  func.func @_sepconv_kernel(%arg0: i32, %arg1: i32, %arg2: memref<1x16x128xf32, #tpu.memory_space<vmem>>, %arg3: memref<1x8x128xf32, #tpu.memory_space<vmem>>, %arg4: memref<3x128xf32, #tpu.memory_space<vmem>>, %arg5: memref<128x128xf32, #tpu.memory_space<vmem>>, %arg6: memref<1x128xf32, #tpu.memory_space<vmem>>, %arg7: memref<1x16x128xf32, #tpu.memory_space<vmem>>) attributes {dimension_semantics = [#tpu.dimension_semantics<parallel>, #tpu.dimension_semantics<parallel>], iteration_bounds = array<i64: 2, 1>, scalar_prefetch = 0 : i64, scratch_operands = 0 : i64, tpu.core_type = #tpu.core_type<tc>, window_params = [{transform_indices = @transform_0, window_bounds = array<i64: 1, 16, 128>}, {transform_indices = @transform_1, window_bounds = array<i64: 1, 8, 128>}, {pipeline_mode = #tpu.pipeline_mode<synchronous>, transform_indices = @transform_2, window_bounds = array<i64: 3, 128>}, {pipeline_mode = #tpu.pipeline_mode<synchronous>, transform_indices = @transform_3, window_bounds = array<i64: 128, 128>}, {pipeline_mode = #tpu.pipeline_mode<synchronous>, transform_indices = @transform_4, window_bounds = array<i64: 1, 128>}, {transform_indices = @transform_5, window_bounds = array<i64: 1, 16, 128>}]} {
    %c0 = arith.constant 0 : index
    %c0_0 = arith.constant 0 : index
    %c0_1 = arith.constant 0 : index
    %0 = vector.load %arg2[%c0, %c0_0, %c0_1] : memref<1x16x128xf32, #tpu.memory_space<vmem>>, vector<1x16x128xf32>
    %1 = vector.shape_cast %0 : vector<1x16x128xf32> to vector<16x128xf32>
    %c0_2 = arith.constant 0 : index
    %c0_3 = arith.constant 0 : index
    %c0_4 = arith.constant 0 : index
    %2 = vector.load %arg3[%c0_2, %c0_3, %c0_4] : memref<1x8x128xf32, #tpu.memory_space<vmem>>, vector<1x8x128xf32>
    %3 = vector.shape_cast %2 : vector<1x8x128xf32> to vector<8x128xf32>
    %4 = tpu.concatenate %1, %3 in 0 : vector<16x128xf32>, vector<8x128xf32> -> vector<24x128xf32>
    %5 = vector.extract_strided_slice %4 {offsets = [0, 0], sizes = [16, 128], strides = [1, 1]} : vector<24x128xf32> to vector<16x128xf32>
    %c0_5 = arith.constant 0 : index
    %c0_6 = arith.constant 0 : index
    %6 = vector.load %arg4[%c0_5, %c0_6] : memref<3x128xf32, #tpu.memory_space<vmem>>, vector<1x128xf32>
    %7 = vector.shape_cast %6 : vector<1x128xf32> to vector<128xf32>
    %8 = vector.shape_cast %7 : vector<128xf32> to vector<1x128xf32>
    %9 = vector.broadcast %8 : vector<1x128xf32> to vector<16x128xf32>
    %10 = arith.mulf %5, %9 : vector<16x128xf32>
    %11 = vector.extract_strided_slice %4 {offsets = [1, 0], sizes = [16, 128], strides = [1, 1]} : vector<24x128xf32> to vector<16x128xf32>
    %c1 = arith.constant 1 : index
    %c0_7 = arith.constant 0 : index
    %12 = vector.load %arg4[%c1, %c0_7] : memref<3x128xf32, #tpu.memory_space<vmem>>, vector<1x128xf32>
    %13 = vector.shape_cast %12 : vector<1x128xf32> to vector<128xf32>
    %14 = vector.shape_cast %13 : vector<128xf32> to vector<1x128xf32>
    %15 = vector.broadcast %14 : vector<1x128xf32> to vector<16x128xf32>
    %16 = arith.mulf %11, %15 : vector<16x128xf32>
    %17 = arith.addf %10, %16 : vector<16x128xf32>
    %18 = vector.extract_strided_slice %4 {offsets = [2, 0], sizes = [16, 128], strides = [1, 1]} : vector<24x128xf32> to vector<16x128xf32>
    %c2 = arith.constant 2 : index
    %c0_8 = arith.constant 0 : index
    %19 = vector.load %arg4[%c2, %c0_8] : memref<3x128xf32, #tpu.memory_space<vmem>>, vector<1x128xf32>
    %20 = vector.shape_cast %19 : vector<1x128xf32> to vector<128xf32>
    %21 = vector.shape_cast %20 : vector<128xf32> to vector<1x128xf32>
    %22 = vector.broadcast %21 : vector<1x128xf32> to vector<16x128xf32>
    %23 = arith.mulf %18, %22 : vector<16x128xf32>
    %24 = arith.addf %17, %23 : vector<16x128xf32>
    %c0_9 = arith.constant 0 : index
    %c0_10 = arith.constant 0 : index
    %25 = vector.load %arg5[%c0_9, %c0_10] : memref<128x128xf32, #tpu.memory_space<vmem>>, vector<128x128xf32>
    %cst = arith.constant dense<0.000000e+00> : vector<16x128xf32>
    %26 = tpu.matmul %24, %25, %cst {dimension_numbers = #tpu.dot_dimension_numbers<[1], [0], [0], [1], [0, 0, 1, 1], [], []>} : vector<16x128xf32>, vector<128x128xf32>, vector<16x128xf32> -> vector<16x128xf32>
    %c0_11 = arith.constant 0 : index
    %c0_12 = arith.constant 0 : index
    %27 = vector.load %arg6[%c0_11, %c0_12] : memref<1x128xf32, #tpu.memory_space<vmem>>, vector<1x128xf32>
    %28 = vector.broadcast %27 : vector<1x128xf32> to vector<16x128xf32>
    %29 = arith.addf %26, %28 : vector<16x128xf32>
    %c0_13 = arith.constant 0 : index
    %c0_14 = arith.constant 0 : index
    %c0_15 = arith.constant 0 : index
    %30 = vector.load %arg7[%c0_13, %c0_14, %c0_15] : memref<1x16x128xf32, #tpu.memory_space<vmem>>, vector<1x16x128xf32>
    %31 = vector.shape_cast %30 : vector<1x16x128xf32> to vector<16x128xf32>
    %32 = vector.shape_cast %29 : vector<16x128xf32> to vector<1x16x128xf32>
    tpu.vector_store %arg7[%c0_13, %c0_14, %c0_15], %32 {strides = array<i32>} : memref<1x16x128xf32, #tpu.memory_space<vmem>>, vector<1x16x128xf32>,
    return
  }
  func.func @transform_0(%arg0: i32, %arg1: i32) -> (i32, i32, i32) {
    %c0_i32 = arith.constant 0 : i32
    %c0_i32_0 = arith.constant 0 : i32
    return %arg0, %arg1, %c0_i32 : i32, i32, i32
  }
  func.func @transform_1(%arg0: i32, %arg1: i32) -> (i32, i32, i32) {
    %c1_i32 = arith.constant 1 : i32
    %0 = arith.addi %arg1, %c1_i32 : i32
    %c2_i32 = arith.constant 2 : i32
    %1 = arith.muli %0, %c2_i32 : i32
    %c0_i32 = arith.constant 0 : i32
    %c0_i32_0 = arith.constant 0 : i32
    return %arg0, %1, %c0_i32 : i32, i32, i32
  }
  func.func @transform_2(%arg0: i32, %arg1: i32) -> (i32, i32) {
    %c0_i32 = arith.constant 0 : i32
    %c0_i32_0 = arith.constant 0 : i32
    %c0_i32_1 = arith.constant 0 : i32
    return %c0_i32, %c0_i32_0 : i32, i32
  }
  func.func @transform_3(%arg0: i32, %arg1: i32) -> (i32, i32) {
    %c0_i32 = arith.constant 0 : i32
    %c0_i32_0 = arith.constant 0 : i32
    %c0_i32_1 = arith.constant 0 : i32
    return %c0_i32, %c0_i32_0 : i32, i32
  }
  func.func @transform_4(%arg0: i32, %arg1: i32) -> (i32, i32) {
    %c0_i32 = arith.constant 0 : i32
    %c0_i32_0 = arith.constant 0 : i32
    %c0_i32_1 = arith.constant 0 : i32
    return %c0_i32, %c0_i32_0 : i32, i32
  }
  func.func @transform_5(%arg0: i32, %arg1: i32) -> (i32, i32, i32) {
    %c0_i32 = arith.constant 0 : i32
    %c0_i32_0 = arith.constant 0 : i32
    return %arg0, %arg1, %c0_i32 : i32, i32, i32
  }
}

</mosaic_0001>

<llo_original>
// kernel: tpu_custom_call.1
$region0: #{tpu_custom_call.1}
  #allocation0 [shape = 'u32[]', space=smem, size = 0x4, offset = 0x4, fixed_abs, tag = 'smem constant byte address 0x4 - core index']
  #allocation1 [shape = 'u32[144,128]{1,0:T(1,128)}', space=vmem, size = 0x12000, scoped, tag = 'internal scratch']
  %s0 = inlined_call_operand.hbm [shape: f32[2,24,128], index: 0, kind: input, shape index: {}]
  %s1 = inlined_call_operand.hbm [shape: f32[2,24,128], index: 1, kind: input, shape index: {}]
  %s2 = inlined_call_operand.vmem [shape: f32[3,128], index: 2, kind: input, shape index: {}]
  %s3 = inlined_call_operand.hbm [shape: f32[128,128], index: 3, kind: input, shape index: {}]
  %s4 = inlined_call_operand.vmem [shape: f32[1,128], index: 4, kind: input, shape index: {}]
  %s5 = inlined_call_operand.hbm [shape: f32[2,16,128], index: 5, kind: output, shape index: {}]
  %s6 = sld [smem:[#allocation0]]
  $region65: #{tpu_custom_call.1} parent=0
    _
  %s8 = ssub.s32 1, %s6
  %s9 = scalar_select 0, %s8, %s6
  $region1: #{tpu_custom_call.1} parent=0
    #allocation2 [shape = 'u8[16384]{0}', space=vmem, size = 0x4000, scoped, tag = 'input window, operand 0']
    #allocation3 [shape = 's32[2]{0}', space=sflag, size = 0x8, scoped, tag = 'scoped memory for tpu_custom_call.1']
    #allocation4 [shape = 's32[2]{0}', space=sflag, size = 0x8, scoped, tag = 'scoped memory for tpu_custom_call.1']
    #allocation5 [shape = 'u8[8192]{0}', space=vmem, size = 0x2000, scoped, tag = 'input window, operand 1']
    #allocation6 [shape = 's32[2]{0}', space=sflag, size = 0x8, scoped, tag = 'scoped memory for tpu_custom_call.1']
    #allocation7 [shape = 'u8[65536]{0}', space=vmem, size = 0x10000, scoped, tag = 'input window, operand 3, single buffered']
    #allocation8 [shape = 'u8[16384]{0}', space=vmem, size = 0x4000, scoped, tag = 'output window, operand 0']
    %10 = vsyncpa [#allocation3], 0
    %s11 = scalar_lea.sflag [#allocation3], 1
    %12 = vsyncpa %s11, 0
    %13 = vsyncpa [#allocation6], 0
    %s14 = scalar_lea.sflag [#allocation6], 1
    %15 = vsyncpa %s14, 0
    %16 = vsyncpa [#allocation4], 0
    %s17 = scalar_lea.sflag [#allocation4], 1
    %18 = vsyncpa %s17, 0
    loop: start=0, step=1, limit=4
    $region2: #{tpu_custom_call.1} parent=1 // loop_pre_header
      _
    $region3: #{tpu_custom_call.1} parent=1 // loop_header
      %s20 = sphi 0, %s24
      %p21 = scmp.ge.s32.totalorder %s20, 4
      %s27 = sphi 0, %s39
      %s28 = sphi 0, %s35
      %s29 = sphi 0, %s27
      %s30 = sphi 0, %s28
      %s31 = sphi 0, %s29
      %s32 = sphi 0, %s30
      %s44 = sphi 0, %s46
      %s47 = sphi 0, %s44
      %s48 = sphi 0, %s47
      %s64 = sphi 0, %s48
      %s76 = sphi 0, %s78
      %s79 = sphi 0, %s76
      %s80 = sphi 0, %s79
      %s96 = sphi 0, %s80
      %s100 = sphi 0, %s100
      %s102 = sphi 0, %s100
      %s103 = sphi 0, %s102
      %s117 = sphi 0, %s103
      %s121 = sphi 0, %s121
      %s123 = sphi 0, %s121
      %s124 = sphi 0, %s123
      %s138 = sphi 0, %s124
      %s142 = sphi 0, %s142
      %s144 = sphi 0, %s142
      %s145 = sphi 0, %s144
      %s159 = sphi 0, %s145
      %s167 = sphi 0, %s169
      %s170 = sphi 0, %s167
      %s171 = sphi 0, %s170
      %s187 = sphi 0, %s171
    $region4: #{tpu_custom_call.1} parent=1 // loop_header_branch
      %23 = sbr.rel (%p21) target = $region8
    $region5: #{tpu_custom_call.1} parent=1 // loop_body
      %s25 = ssub.s32 %s20, 1
      %s26 = ssub.s32 %s20, 2
      %s33 = sadd.s32 1, %s28
      %p34 = scmp.ge.s32.totalorder %s33, 1
      %s35 = scalar_select %p34, 0, %s33
      %s36 = sadd.s32 1, %s27
      %s37 = scalar_select %p34, %s36, %s27
      %p38 = scmp.ge.s32.totalorder %s37, 2
      %s39 = scalar_select %p38, 0, %s37
      %s40 = ssub.s32 %s27, %s39
      %s41 = ssub.s32 %s28, %s35
      %s42 = sor.u32 %s40, %s41
      %p43 = scmp.eq.s32.totalorder %s42, 0
      %s45 = sadd.s32 %s44, 1
      %s46 = scalar_select %p43, %s44, %s45
      %p49 = pneg %p43
      %p50 = scmp.eq.s32.totalorder %s20, 1
      %p51 = por %p49, %p50
      %p52 = scmp.ne.s32.totalorder %s44, %s47
      %p53 = scmp.eq.s32.totalorder %s20, 0
      %p54 = por %p52, %p53
      %p55 = scmp.ne.s32.totalorder %s44, %s47
      %p56 = scmp.eq.s32.totalorder %s25, 1
      %p57 = por %p55, %p56
      %p58 = scmp.ne.s32.totalorder %s47, %s48
      %p59 = scmp.eq.s32.totalorder %s25, 0
      %p60 = por %p58, %p59
      %p61 = scmp.ne.s32.totalorder %s47, %s48
      %p62 = scmp.eq.s32.totalorder %s26, 1
      %p63 = por %p61, %p62
      %p65 = scmp.ne.s32.totalorder %s48, %s64
      %p66 = scmp.eq.s32.totalorder %s26, 0
      %p67 = por %p65, %p66
      %s68 = sadd.s32 %s28, 1
      %s69 = smul.u32 %s68, 2
      %s70 = sadd.s32 %s35, 1
      %s71 = smul.u32 %s70, 2
      %s72 = ssub.s32 %s27, %s39
      %s73 = ssub.s32 %s69, %s71
      %s74 = sor.u32 %s72, %s73
      %p75 = scmp.eq.s32.totalorder %s74, 0
      %s77 = sadd.s32 %s76, 1
      %s78 = scalar_select %p75, %s76, %s77
      %p81 = pneg %p75
      %p82 = scmp.eq.s32.totalorder %s20, 1
      %p83 = por %p81, %p82
      %p84 = scmp.ne.s32.totalorder %s76, %s79
      %p85 = scmp.eq.s32.totalorder %s20, 0
      %p86 = por %p84, %p85
      %p87 = scmp.ne.s32.totalorder %s76, %s79
      %p88 = scmp.eq.s32.totalorder %s25, 1
      %p89 = por %p87, %p88
      %p90 = scmp.ne.s32.totalorder %s79, %s80
      %p91 = scmp.eq.s32.totalorder %s25, 0
      %p92 = por %p90, %p91
      %p93 = scmp.ne.s32.totalorder %s79, %s80
      %p94 = scmp.eq.s32.totalorder %s26, 1
      %p95 = por %p93, %p94
      %p97 = scmp.ne.s32.totalorder %s80, %s96
      %p98 = scmp.eq.s32.totalorder %s26, 0
      %p99 = por %p97, %p98
      %s101 = sadd.s32 %s100, 1
      %p104 = scmp.eq.s32.totalorder %s20, 1
      %p105 = scmp.ne.s32.totalorder %s100, %s102
      %p106 = scmp.eq.s32.totalorder %s20, 0
      %p107 = por %p105, %p106
      %p108 = scmp.ne.s32.totalorder %s100, %s102
      %p109 = scmp.eq.s32.totalorder %s25, 1
      %p110 = por %p108, %p109
      %p111 = scmp.ne.s32.totalorder %s102, %s103
      %p112 = scmp.eq.s32.totalorder %s25, 0
      %p113 = por %p111, %p112
      %p114 = scmp.ne.s32.totalorder %s102, %s103
      %p115 = scmp.eq.s32.totalorder %s26, 1
      %p116 = por %p114, %p115
      %p118 = scmp.ne.s32.totalorder %s103, %s117
      %p119 = scmp.eq.s32.totalorder %s26, 0
      %p120 = por %p118, %p119
      %s122 = sadd.s32 %s121, 1
      %p125 = scmp.eq.s32.totalorder %s20, 1
      %p126 = scmp.ne.s32.totalorder %s121, %s123
      %p127 = scmp.eq.s32.totalorder %s20, 0
      %p128 = por %p126, %p127
      %p129 = scmp.ne.s32.totalorder %s121, %s123
      %p130 = scmp.eq.s32.totalorder %s25, 1
      %p131 = por %p129, %p130
      %p132 = scmp.ne.s32.totalorder %s123, %s124
      %p133 = scmp.eq.s32.totalorder %s25, 0
      %p134 = por %p132, %p133
      %p135 = scmp.ne.s32.totalorder %s123, %s124
      %p136 = scmp.eq.s32.totalorder %s26, 1
      %p137 = por %p135, %p136
      %p139 = scmp.ne.s32.totalorder %s124, %s138
      %p140 = scmp.eq.s32.totalorder %s26, 0
      %p141 = por %p139, %p140
      %s143 = sadd.s32 %s142, 1
      %p146 = scmp.eq.s32.totalorder %s20, 1
      %p147 = scmp.ne.s32.totalorder %s142, %s144
      %p148 = scmp.eq.s32.totalorder %s20, 0
      %p149 = por %p147, %p148
      %p150 = scmp.ne.s32.totalorder %s142, %s144
      %p151 = scmp.eq.s32.totalorder %s25, 1
      %p152 = por %p150, %p151
      %p153 = scmp.ne.s32.totalorder %s144, %s145
      %p154 = scmp.eq.s32.totalorder %s25, 0
      %p155 = por %p153, %p154
      %p156 = scmp.ne.s32.totalorder %s144, %s145
      %p157 = scmp.eq.s32.totalorder %s26, 1
      %p158 = por %p156, %p157
      %p160 = scmp.ne.s32.totalorder %s145, %s159
      %p161 = scmp.eq.s32.totalorder %s26, 0
      %p162 = por %p160, %p161
      %s163 = ssub.s32 %s27, %s39
      %s164 = ssub.s32 %s28, %s35
      %s165 = sor.u32 %s163, %s164
      %p166 = scmp.eq.s32.totalorder %s165, 0
      %s168 = sadd.s32 %s167, 1
      %s169 = scalar_select %p166, %s167, %s168
      %p172 = pneg %p166
      %p173 = scmp.eq.s32.totalorder %s20, 1
      %p174 = por %p172, %p173
      %p175 = scmp.ne.s32.totalorder %s167, %s170
      %p176 = scmp.eq.s32.totalorder %s20, 0
      %p177 = por %p175, %p176
      %p178 = scmp.ne.s32.totalorder %s167, %s170
      %p179 = scmp.eq.s32.totalorder %s25, 1
      %p180 = por %p178, %p179
      %p181 = scmp.ne.s32.totalorder %s170, %s171
      %p182 = scmp.eq.s32.totalorder %s25, 0
      %p183 = por %p181, %p182
      %p184 = scmp.ne.s32.totalorder %s170, %s171
      %p185 = scmp.eq.s32.totalorder %s26, 1
      %p186 = por %p184, %p185
      %p188 = scmp.ne.s32.totalorder %s171, %s187
      %p189 = scmp.eq.s32.totalorder %s26, 0
      %p190 = por %p188, %p189
      %p191 = scmp.le.s32.totalorder 1, %s20
      %p192 = scmp.lt.s32.totalorder %s20, 3
      %p193 = pnand %p191, %p192
      %p194 = pneg %p193
      // Predicated region
      $region9: #{tpu_custom_call.1} parent=5 // pred_check
        _
      $region10: #{tpu_custom_call.1} parent=5 // pred_check_branch
        %196 = sbr.rel (%p193) target = $region12
      $region11: #{tpu_custom_call.1} parent=5 // pred_region
        %s197 = ssub.s32 %s20, 1
        // Predicated region
        $region13: #{tpu_custom_call.1} parent=11 // pred_check
          %p198 = pneg %p113
        $region14: #{tpu_custom_call.1} parent=11 // pred_check_branch
          %200 = sbr.rel (%p198) target = $region16
        $region15: #{tpu_custom_call.1} parent=11 // pred_region
          _
        $region16: #{tpu_custom_call.1} parent=11 // pred_fallthru
          _
        // Predicated region
        $region17: #{tpu_custom_call.1} parent=11 // pred_check
          %p201 = pneg %p134
        $region18: #{tpu_custom_call.1} parent=11 // pred_check_branch
          %203 = sbr.rel (%p201) target = $region20
        $region19: #{tpu_custom_call.1} parent=11 // pred_region
          %s205 = ssub.s32 2048, 2048
          %206 = vsyncadd [#allocation6], %s205
          %s207 = sshll.u32 [#allocation7], 4
          %s208 = int_to_ptr.vmem [resolvable:$true] %s207
          %213 = dma.hbm_to_vmem [thread:$0]  %s3, 2048, %s208, [#allocation6], 128, 128, 8
        $region20: #{tpu_custom_call.1} parent=11 // pred_fallthru
          _
        // Predicated region
        $region21: #{tpu_custom_call.1} parent=11 // pred_check
          %p214 = pneg %p155
        $region22: #{tpu_custom_call.1} parent=11 // pred_check_branch
          %216 = sbr.rel (%p214) target = $region24
        $region23: #{tpu_custom_call.1} parent=11 // pred_region
          _
        $region24: #{tpu_custom_call.1} parent=11 // pred_fallthru
          _
      $region12: #{tpu_custom_call.1} parent=5 // pred_fallthru
        _
      %p217 = scmp.lt.s32.totalorder %s20, 2
      // Predicated region
      $region25: #{tpu_custom_call.1} parent=5 // pred_check
        %p218 = pneg %p217
      $region26: #{tpu_custom_call.1} parent=5 // pred_check_branch
        %220 = sbr.rel (%p218) target = $region28
      $region27: #{tpu_custom_call.1} parent=5 // pred_region
        // Predicated region
        $region29: #{tpu_custom_call.1} parent=27 // pred_check
          %p221 = pneg %p54
        $region30: #{tpu_custom_call.1} parent=27 // pred_check_branch
          %223 = sbr.rel (%p221) target = $region32
        $region31: #{tpu_custom_call.1} parent=27 // pred_region
          %s224 = sand.u32 %s44, 1
          %s225 = scalar_lea.sflag [#allocation3], %s224
          %s226 = sand.u32 %s44, 1
          %s227 = smul.addr %s226, 16
          %s228 = scalar_lea.vmem [#allocation2], %s227
          %s229 = smul.u32 2, %s28
          %s230 = ssub.s32 3, %s229
          %p231 = scmp.lt.s32.totalorder %s230, 2
          %s232 = scalar_select %p231, %s230, 2
          %s233 = smul.u32 128, %s232
          %s235 = ssub.s32 256, %s233
          %236 = vsyncadd %s225, %s235
          %p237 = scmp.ne.s32.totalorder 0, %s233
          %s238 = smul.addr %s27, 3
          %s239 = sadd.s32 %s229, %s238
          %s240 = smul.addr %s239, 128
          %s241 = scalar_lea.hbm %s0, %s240
          %s242 = smul.u32 8, %s232
          %s243 = sshll.u32 %s228, 4
          %s244 = int_to_ptr.vmem [resolvable:$true] %s243
          %s245 = sshll.u32 %s242, 4
          %249 = dma.hbm_to_vmem [thread:$0]  (%p237), %s241, %s245, %s244, %s225, 128, 128, 8
        $region32: #{tpu_custom_call.1} parent=27 // pred_fallthru
          _
        // Predicated region
        $region33: #{tpu_custom_call.1} parent=27 // pred_check
          %p250 = pneg %p86
        $region34: #{tpu_custom_call.1} parent=27 // pred_check_branch
          %252 = sbr.rel (%p250) target = $region36
        $region35: #{tpu_custom_call.1} parent=27 // pred_region
          %s253 = sand.u32 %s20, 1
          %s254 = scalar_lea.sflag [#allocation6], %s253
          %s255 = sand.u32 %s76, 1
          %s256 = smul.addr %s255, 8
          %s257 = scalar_lea.vmem [#allocation5], %s256
          %s258 = sadd.s32 %s28, 1
          %s259 = smul.u32 %s258, 2
          %s261 = ssub.s32 128, 128
          %262 = vsyncadd %s254, %s261
          %s263 = smul.addr %s27, 3
          %s264 = sadd.s32 %s259, %s263
          %s265 = smul.addr %s264, 128
          %s266 = scalar_lea.hbm %s1, %s265
          %s268 = sshll.u32 %s257, 4
          %s269 = int_to_ptr.vmem [resolvable:$true] %s268
          %271 = dma.hbm_to_vmem [thread:$0]  %s266, 128, %s269, %s254
        $region36: #{tpu_custom_call.1} parent=27 // pred_fallthru
          _
      $region28: #{tpu_custom_call.1} parent=5 // pred_fallthru
        _
      %p272 = scmp.le.s32.totalorder 1, %s20
      %p273 = scmp.lt.s32.totalorder %s20, 3
      %p274 = pnand %p272, %p273
      %p275 = pneg %p274
      // Predicated region
      $region37: #{tpu_custom_call.1} parent=5 // pred_check
        _
      $region38: #{tpu_custom_call.1} parent=5 // pred_check_branch
        %277 = sbr.rel (%p274) target = $region40
      $region39: #{tpu_custom_call.1} parent=5 // pred_region
        %s278 = ssub.s32 %s20, 1
        %s279 = sand.u32 %s47, 1
        %s280 = scalar_lea.sflag [#allocation3], %s279
        %s281 = sand.u32 %s47, 1
        %s282 = smul.addr %s281, 16
        %s283 = scalar_lea.vmem [#allocation2], %s282
        // Predicated region
        $region41: #{tpu_custom_call.1} parent=39 // pred_check
          %p284 = pneg %p60
        $region42: #{tpu_custom_call.1} parent=39 // pred_check_branch
          %286 = sbr.rel (%p284) target = $region44
        $region43: #{tpu_custom_call.1} parent=39 // pred_region
          %287 = dma.done %s280, 256
        $region44: #{tpu_custom_call.1} parent=39 // pred_fallthru
          _
        %s288 = sand.u32 %s25, 1
        %s289 = scalar_lea.sflag [#allocation6], %s288
        %s290 = sand.u32 %s79, 1
        %s291 = smul.addr %s290, 8
        %s292 = scalar_lea.vmem [#allocation5], %s291
        // Predicated region
        $region45: #{tpu_custom_call.1} parent=39 // pred_check
          %p293 = pneg %p92
        $region46: #{tpu_custom_call.1} parent=39 // pred_check_branch
          %295 = sbr.rel (%p293) target = $region48
        $region47: #{tpu_custom_call.1} parent=39 // pred_region
          %296 = dma.done %s289, 128
        $region48: #{tpu_custom_call.1} parent=39 // pred_fallthru
          _
        // Predicated region
        $region49: #{tpu_custom_call.1} parent=39 // pred_check
          %p297 = pneg %p134
        $region50: #{tpu_custom_call.1} parent=39 // pred_check_branch
          %299 = sbr.rel (%p297) target = $region52
        $region51: #{tpu_custom_call.1} parent=39 // pred_region
          %300 = dma.done [#allocation6], 2048
        $region52: #{tpu_custom_call.1} parent=39 // pred_fallthru
          _
        %s301 = sand.u32 %s47, 1
        %s302 = scalar_lea.sflag [#allocation3], %s301
        %s303 = sand.u32 %s47, 1
        %s304 = smul.addr %s303, 16
        %s305 = scalar_lea.vmem [#allocation2], %s304
        %p306 = pneg %p60
        %p307 = pneg %p57
        %s308 = sand.u32 %s25, 1
        %s309 = scalar_lea.sflag [#allocation6], %s308
        %s310 = sand.u32 %s79, 1
        %s311 = smul.addr %s310, 8
        %s312 = scalar_lea.vmem [#allocation5], %s311
        %p313 = pneg %p92
        %p314 = pneg %p89
        %p315 = pneg %p113
        %p316 = pneg %p110
        %p317 = pneg %p134
        %p318 = pneg %p131
        %p319 = pneg %p155
        %p320 = pneg %p152
        %p321 = pneg %p183
        %p322 = pneg %p180
        %s323 = sand.u32 %s170, 1
        %s324 = scalar_lea.sflag [#allocation4], %s323
        %s325 = sand.u32 %s170, 1
        %s326 = smul.addr %s325, 16
        %s327 = scalar_lea.vmem [#allocation8], %s326
        %s328 = smul.u32 2, %s30
        %s329 = ssub.s32 3, %s328
        %p330 = scmp.lt.s32.totalorder %s329, 2
        %s331 = scalar_select %p330, %s329, 2
        %s332 = smul.u32 128, %s331
        %s333 = sadd.s32 %s30, 1
        %s334 = smul.u32 %s333, 2
        %s335 = smul.u32 2, %s30
        %v336 = vld [vmem:[%s283] sm:$0xff]
        %v337 = vld [vmem:[%s283 + $0x8] sm:$0xff]
        %v338 = vld [vmem:[%s292] sm:$0xff]
        %v339 = vld [vmem:[%s2] sm:$0x1]
        %v340 = vlaneseq
        %v341 = vshrl.u32 %v340, 7
        %v342 = vsub.s32 0, %v341
        %v343 = vrot.slane %v339, %v342
        %v344 = vmul.f32 %v336, %v343
        %v345 = vmul.f32 %v337, %v343
        %v346 = vld [vmem:[%s2 + $0x1] sm:$0x1]
        %v347 = vlaneseq
        %v348 = vshrl.u32 %v347, 7
        %v349 = vsub.s32 0, %v348
        %v350 = vrot.slane %v346, %v349
        %v351 = vmul.f32 %v336, %v350
        %v352 = vmul.f32 %v337, %v350
        %v353 = vmul.f32 %v338, %v350
        %vm357 = vcmask 1046528
        %v358 = vrot.slane %v351, 1
        %v359 = vrot.slane %v352, 1
        %v360 = vsel %vm357, %v358, %v359
        %v361 = vrot.slane %v353, 1
        %v362 = vsel %vm357, %v359, %v361
        %v365 = vadd.f32 %v344, %v360
        %v366 = vadd.f32 %v345, %v362
        %v367 = vld [vmem:[%s2 + $0x2] sm:$0x1]
        %v368 = vlaneseq
        %v369 = vshrl.u32 %v368, 7
        %v370 = vsub.s32 0, %v369
        %v371 = vrot.slane %v367, %v370
        %v372 = vmul.f32 %v336, %v371
        %v373 = vmul.f32 %v337, %v371
        %v374 = vmul.f32 %v338, %v371
        %vm378 = vcmask 1045504
        %v379 = vrot.slane %v372, 2
        %v380 = vrot.slane %v373, 2
        %v381 = vsel %vm378, %v379, %v380
        %v382 = vrot.slane %v374, 2
        %v383 = vsel %vm378, %v380, %v382
        %v386 = vadd.f32 %v365, %v381
        %v387 = vadd.f32 %v366, %v383
        %v388 = vld [vmem:[#allocation7] sm:$0xff]
        %v389 = vld [vmem:[#allocation7 + $0x8] sm:$0xff]
        %v390 = vld [vmem:[#allocation7 + $0x10] sm:$0xff]
        %v391 = vld [vmem:[#allocation7 + $0x18] sm:$0xff]
        %v392 = vld [vmem:[#allocation7 + $0x20] sm:$0xff]
        %v393 = vld [vmem:[#allocation7 + $0x28] sm:$0xff]
        %v394 = vld [vmem:[#allocation7 + $0x30] sm:$0xff]
        %v395 = vld [vmem:[#allocation7 + $0x38] sm:$0xff]
        %v396 = vld [vmem:[#allocation7 + $0x40] sm:$0xff]
        %v397 = vld [vmem:[#allocation7 + $0x48] sm:$0xff]
        %v398 = vld [vmem:[#allocation7 + $0x50] sm:$0xff]
        %v399 = vld [vmem:[#allocation7 + $0x58] sm:$0xff]
        %v400 = vld [vmem:[#allocation7 + $0x60] sm:$0xff]
        %v401 = vld [vmem:[#allocation7 + $0x68] sm:$0xff]
        %v402 = vld [vmem:[#allocation7 + $0x70] sm:$0xff]
        %v403 = vld [vmem:[#allocation7 + $0x78] sm:$0xff]
        %v404 = vld [vmem:[%s4] sm:$0x1]
        %v406 = vlaneseq
        %v407 = vshrl.u32 %v406, 7
        %v408 = vsub.s32 0, %v407
        %v409 = vrot.slane %v404, %v408
        %411 = vmatprep.subr.mxu0 0.0
        %412 = vmatpush1.msra.mxu0 %v388
        %413 = vmatprep.subr.mxu0 0.0
        %414 = vmatpush1.msra.mxu0 %v389
        %415 = vmatprep.subr.mxu0 0.0
        %416 = vmatpush1.msra.mxu0 %v390
        %417 = vmatprep.subr.mxu0 0.0
        %418 = vmatpush1.msra.mxu0 %v391
        %419 = vmatprep.subr.mxu0 0.0
        %420 = vmatpush1.msra.mxu0 %v392
        %421 = vmatprep.subr.mxu0 0.0
        %422 = vmatpush1.msra.mxu0 %v393
        %423 = vmatprep.subr.mxu0 0.0
        %424 = vmatpush1.msra.mxu0 %v394
        %425 = vmatprep.subr.mxu0 0.0
        %426 = vmatpush1.msra.mxu0 %v395
        %427 = vmatprep.subr.mxu0 0.0
        %428 = vmatpush1.msra.mxu0 %v396
        %429 = vmatprep.subr.mxu0 0.0
        %430 = vmatpush1.msra.mxu0 %v397
        %431 = vmatprep.subr.mxu0 0.0
        %432 = vmatpush1.msra.mxu0 %v398
        %433 = vmatprep.subr.mxu0 0.0
        %434 = vmatpush1.msra.mxu0 %v399
        %435 = vmatprep.subr.mxu0 0.0
        %436 = vmatpush1.msra.mxu0 %v400
        %437 = vmatprep.subr.mxu0 0.0
        %438 = vmatpush1.msra.mxu0 %v401
        %439 = vmatprep.subr.mxu0 0.0
        %440 = vmatpush1.msra.mxu0 %v402
        %441 = vmatprep.subr.mxu0 0.0
        %442 = vmatpush1.msra.mxu0 %v403
        %443 = vmatprep.subr.mxu0 0.0
        %444 = vmatpush1.msra.mxu0 0.0
        %445 = vmatprep.subr.mxu0 0.0
        %446 = vmatpush1.msra.mxu0 0.0
        %447 = vmatprep.subr.mxu0 0.0
        %448 = vmatpush1.msra.mxu0 0.0
        %449 = vmatprep.subr.mxu0 0.0
        %450 = vmatpush1.msra.mxu0 0.0
        %451 = vmatprep.subr.mxu0 0.0
        %452 = vmatpush1.msra.mxu0 0.0
        %453 = vmatprep.subr.mxu0 0.0
        %454 = vmatpush1.msra.mxu0 0.0
        %455 = vmatprep.subr.mxu0 0.0
        %456 = vmatpush1.msra.mxu0 0.0
        %457 = vmatprep.subr.mxu0 0.0
        %458 = vmatpush1.msra.mxu0 0.0
        %459 = vmatprep.subr.mxu0 0.0
        %460 = vmatpush1.msra.mxu0 0.0
        %461 = vmatprep.subr.mxu0 0.0
        %462 = vmatpush1.msra.mxu0 0.0
        %463 = vmatprep.subr.mxu0 0.0
        %464 = vmatpush1.msra.mxu0 0.0
        %465 = vmatprep.subr.mxu0 0.0
        %466 = vmatpush1.msra.mxu0 0.0
        %467 = vmatprep.subr.mxu0 0.0
        %468 = vmatpush1.msra.mxu0 0.0
        %469 = vmatprep.subr.mxu0 0.0
        %470 = vmatpush1.msra.mxu0 0.0
        %471 = vmatprep.subr.mxu0 0.0
        %472 = vmatpush1.msra.mxu0 0.0
        %473 = vmatprep.subr.mxu0 0.0
        %474 = vmatpush1.msra.mxu0 0.0
        %475 = vmatprep.mubr.f32.mxu0 0.0
        %476 = vmatmul.mubr.f32.gmra.mrb[0].mxu0 %v386
        %v477 = vpop.f32.mrb[0].mxu0
        %v478 = vadd.f32 %v409, %v477
        %v479 = vpop.f32.mrb[0].mxu0
        %480 = vmatprep.mubr.f32.mxu0 0.0
        %481 = vmatmul.mubr.f32.gmra.mrb[0].mxu0 %v387
        %v482 = vpop.f32.mrb[0].mxu0
        %v483 = vadd.f32 %v409, %v482
        %v484 = vpop.f32.mrb[0].mxu0
        %485 = vdwg.mxu0
        %486 = vst [vmem:[%s327] sm:$0xff] %v478
        %487 = vst [vmem:[%s327 + $0x8] sm:$0xff] %v483
        %s488 = sand.u32 %s170, 1
        %s489 = scalar_lea.sflag [#allocation4], %s488
        %s490 = sand.u32 %s170, 1
        %s491 = smul.addr %s490, 16
        %s492 = scalar_lea.vmem [#allocation8], %s491
        // Predicated region
        $region53: #{tpu_custom_call.1} parent=39 // pred_check
          %p493 = pneg %p180
        $region54: #{tpu_custom_call.1} parent=39 // pred_check_branch
          %495 = sbr.rel (%p493) target = $region56
        $region55: #{tpu_custom_call.1} parent=39 // pred_region
          %s496 = smul.u32 2, %s30
          %s498 = ssub.s32 256, 256
          %499 = vsyncadd %s489, %s498
          %s500 = smul.addr %s29, 2
          %s501 = sadd.s32 %s496, %s500
          %s502 = smul.addr %s501, 128
          %s503 = scalar_lea.hbm %s5, %s502
          %s504 = sshll.u32 %s492, 4
          %s505 = int_to_ptr.vmem [resolvable:$true] %s504
          %510 = dma.vmem_to_hbm [thread:$0]  %s505, 256, %s503, %s489, 128, 128, 8
        $region56: #{tpu_custom_call.1} parent=39 // pred_fallthru
          _
      $region40: #{tpu_custom_call.1} parent=5 // pred_fallthru
        _
      %p511 = scmp.le.s32.totalorder 2, %s20
      // Predicated region
      $region57: #{tpu_custom_call.1} parent=5 // pred_check
        %p512 = pneg %p511
      $region58: #{tpu_custom_call.1} parent=5 // pred_check_branch
        %514 = sbr.rel (%p512) target = $region60
      $region59: #{tpu_custom_call.1} parent=5 // pred_region
        %s515 = ssub.s32 %s20, 2
        // Predicated region
        $region61: #{tpu_custom_call.1} parent=59 // pred_check
          %p516 = pneg %p186
        $region62: #{tpu_custom_call.1} parent=59 // pred_check_branch
          %518 = sbr.rel (%p516) target = $region64
        $region63: #{tpu_custom_call.1} parent=59 // pred_region
          %s519 = sand.u32 %s171, 1
          %s520 = scalar_lea.sflag [#allocation4], %s519
          %s521 = sand.u32 %s171, 1
          %s522 = smul.addr %s521, 16
          %s523 = scalar_lea.vmem [#allocation8], %s522
          %524 = dma.done %s520, 256
        $region64: #{tpu_custom_call.1} parent=59 // pred_fallthru
          _
      $region60: #{tpu_custom_call.1} parent=5 // pred_fallthru
        _
    $region6: #{tpu_custom_call.1} parent=1 // loop_footer
      %s24 = sadd.s32 1, %s20
    $region7: #{tpu_custom_call.1} parent=1 // loop_footer_branch
      %19 = sbr.rel target = $region3
    $region8: #{tpu_custom_call.1} parent=1 // loop_exit
      _
    %525 = vsyncpa [#allocation3], 1
    %s526 = scalar_lea.sflag [#allocation3], 1
    %527 = vsyncpa %s526, 1
    %528 = vsyncpa [#allocation6], 1
    %s529 = scalar_lea.sflag [#allocation6], 1
    %530 = vsyncpa %s529, 1
    %531 = vsyncpa [#allocation4], 1
    %s532 = scalar_lea.sflag [#allocation4], 1
    %533 = vsyncpa %s532, 1

</llo_original>
